<compile_context>
chip_gen: v5e
topology: v5e:2x2
jax: 0.10.0
libtpu: 0.0.40
codegen_flags: <defaults>
</compile_context>

<pallas_src>
import jax
import jax.numpy as jnp
from jax.experimental import pallas as pl
from jax.experimental.pallas import tpu as pltpu


_VMEM_LIMIT = 32 * 1024 * 1024   # scoped VMEM limit we request (safe on v5e/v6e/v7x)
_VMEM_BUDGET = 26 * 1024 * 1024  # what we let the tile picker account for (headroom)


def _pe_mlp_kernel(x_ref, w1t_ref, b1_ref, w2t_ref, b2_ref, o_ref):
    """2-layer MLP over one (bt, tn) tile of tokens, channels-first.

    x_ref  : (bt, 3, TN)  tokens (already referenced to the w==0 column)
    w1t_ref: (C, 3)       transposed Linear(3->C) weight (resident)
    b1_ref : (C, 1)
    w2t_ref: (C, C)       transposed Linear(C->C) weight (resident)
    b2_ref : (C, 1)
    o_ref  : (bt, C, TN)

    Ragged tiles: padded lanes / batch rows carry unspecified data, but every
    op below is per-lane / per-row independent, and out-of-bounds stores are
    masked by Pallas, so the garbage never reaches HBM.
    """
    w1t = w1t_ref[...]            # (C, 3)
    b1 = b1_ref[...]              # (C, 1)
    w2t = w2t_ref[...]            # (C, C)
    b2 = b2_ref[...]              # (C, 1)

    # Static unroll over the (small) batch tile; each iteration works on a
    # lane-dense (3, TN) slab and writes a lane-dense (C, TN) slab.
    for bb in range(x_ref.shape[0]):
        x = x_ref[bb]                                       # (3, TN) full-lane load

        # Layer 1: K == 3 -> three VPU broadcast-FMAs (exact f32), skip the MXU.
        # TODO(synk): on v7x (3.2 TB/s HBM) this ~7-VALU-op/elem chain can become
        # the binding slot; if so, switch to an MXU pass:
        #   jnp.dot(w1t, x, preferred_element_type=jnp.float32,
        #           precision=jax.lax.Precision.HIGHEST)
        h = (w1t[:, 0:1] * x[0:1, :]
             + w1t[:, 1:2] * x[1:2, :]
             + w1t[:, 2:3] * x[2:3, :])
        h = jnp.maximum(h + b1, 0.0)                        # (C, TN)

        # Layer 2: proper MXU matmul with f32 accumulation.
        y = jnp.dot(w2t, h, preferred_element_type=jnp.float32)
        o_ref[bb] = (y + b2).astype(o_ref.dtype)            # lane-dense store


def _per_token_row_bytes(C):
    """Conservative VMEM bytes per token per batch row at f32:
    double-buffered in+out tiles (2*(3+C)) + matmul intermediates h, y (2*C)
    + the loaded x value (3)."""
    return 4 * (2 * (3 + C) + 2 * C + 3)


def _pick_tiles(B, C, HW, tile_tokens, tile_batch):
    """Pick (batch_tile, token_tile).

    Token tile: largest multiple of 128 <= min(tile_tokens, VMEM budget), or the
    full extent HW when it already fits -- a ragged (masked) last tile is fine.
    Batch tile: when one token tile covers the whole image, widen over batch so
    each grid step moves >= ~1 MiB (amortizes the ~0.35us per-step overhead).
    """
    row_bytes = _per_token_row_bytes(C)
    max_tok = max(128, _VMEM_BUDGET // row_bytes)
    target = max(128, min(int(tile_tokens), max_tok))
    tn = HW if HW <= target else (target // 128) * 128      # ragged tail allowed

    if tile_batch is not None:
        return max(1, min(int(tile_batch), B)), tn

    bt = 1
    if tn == HW:
        hbm_row = (3 + C) * HW * 4                          # bytes moved per row per step
        want = max(1, (1 << 20) // hbm_row)                 # reach ~1 MiB per step
        cap = max(1, _VMEM_BUDGET // (row_bytes * HW))      # stay inside VMEM budget
        bt = int(min(B, want, cap, 16))                     # 16: keep static unroll small
    return bt, tn


def pe_carte_mlp(x, w1, b1, w2, b2, *, tile_tokens=32768, tile_batch=None,
                 out_dtype=jnp.float32):
    """x: (B, 3, H, W) float32 -> (B, C, H, W) out_dtype."""
    B, Cin, H, W = x.shape
    assert Cin == 3, "PositionalEncoding_carte_mlp expects 3 input channels"
    C = w1.shape[1]
    HW = H * W

    # Broadcast subtraction of the w==0 column (one cheap 3-channel pass), then
    # a *free* reshape into channels-first token layout: no transposes anywhere.
    xc = (x - x[:, :, :, 0:1]).reshape(B, 3, HW)

    # Channels-first parameters.
    w1t = w1.T                    # (C, 3)
    w2t = w2.T                    # (C, C)
    b1c = b1.reshape(C, 1)
    b2c = b2.reshape(C, 1)

    bt, tn = _pick_tiles(B, C, HW, tile_tokens, tile_batch)
    grid = (pl.cdiv(B, bt), pl.cdiv(HW, tn))

    cost = pl.CostEstimate(
        flops=int(2 * C * (3 + C) * B * HW),
        transcendentals=0,
        bytes_accessed=int((3 + C) * B * HW * 4),
    )

    out_flat = pl.pallas_call(
        _pe_mlp_kernel,
        out_shape=jax.ShapeDtypeStruct((B, C, HW), out_dtype),
        grid_spec=pltpu.PrefetchScalarGridSpec(
            num_scalar_prefetch=0,
            grid=grid,
            in_specs=[
                pl.BlockSpec((bt, 3, tn), lambda b, i: (b, 0, i)),   # x tokens
                pl.BlockSpec((C, 3), lambda b, i: (0, 0)),           # W1^T (resident)
                pl.BlockSpec((C, 1), lambda b, i: (0, 0)),           # b1
                pl.BlockSpec((C, C), lambda b, i: (0, 0)),           # W2^T (resident)
                pl.BlockSpec((C, 1), lambda b, i: (0, 0)),           # b2
            ],
            out_specs=pl.BlockSpec((bt, C, tn), lambda b, i: (b, 0, i)),
        ),
        compiler_params=pltpu.CompilerParams(
            dimension_semantics=("parallel", "parallel"),
            vmem_limit_bytes=_VMEM_LIMIT,
        ),
        cost_estimate=cost,
    )(xc, w1t, b1c, w2t, b2c)

    # Free reshape: already NCHW channel-major in memory.
    return out_flat.reshape(B, C, H, W)


def init_params(key, out_channels):
    """Deterministic init mimicking torch.nn.Linear (uniform +/- 1/sqrt(fan_in))."""
    k1, k2, k3, k4 = jax.random.split(key, 4)
    bound1 = 1.0 / jnp.sqrt(3.0)
    bound2 = 1.0 / jnp.sqrt(float(out_channels))
    w1 = jax.random.uniform(k1, (3, out_channels), jnp.float32, -bound1, bound1)
    b1 = jax.random.uniform(k2, (out_channels,), jnp.float32, -bound1, bound1)
    w2 = jax.random.uniform(k3, (out_channels, out_channels), jnp.float32, -bound2, bound2)
    b2 = jax.random.uniform(k4, (out_channels,), jnp.float32, -bound2, bound2)
    return w1, b1, w2, b2


def reference(x, w1, b1, w2, b2):
    x = x - x[:, :, :, 0:1]
    xh = jnp.transpose(x, (0, 2, 3, 1))          # (B, H, W, 3)
    # Layer 1 (K=3) computed elementwise so the reference matches the kernel's
    # exact f32 broadcast-FMA path; same math as nn.Linear(3, C).
    h = xh[..., 0:1] * w1[0] + xh[..., 1:2] * w1[1] + xh[..., 2:3] * w1[2] + b1
    h = jnp.maximum(h, 0.0)
    y = h @ w2 + b2
    return jnp.transpose(y, (0, 3, 1, 2))        # (B, C, H, W)


if __name__ == "__main__":
    key = jax.random.PRNGKey(0)
    kx1, kp1, kx2, kp2, kx3 = jax.random.split(key, 5)

    pe_fn = jax.jit(pe_carte_mlp,
                    static_argnames=("tile_tokens", "tile_batch", "out_dtype"))

    # 1) Default config: B=2, C=32, 16x16 -> single grid step, batch-widened block.
    B, H, W, C = 2, 16, 16, 32
    x = jax.random.normal(kx1, (B, 3, H, W), jnp.float32)
    p = init_params(kp1, C)
    out = jax.block_until_ready(pe_fn(x, *p))
    ref = reference(x, *p)
    assert out.shape == (B, C, H, W)
    assert jnp.allclose(out, ref, atol=1e-5, rtol=1e-5)

    # 2) Multi-tile token axis with a ragged (masked) last tile:
    #    HW = 24*20 = 480, tile_tokens=128 -> 4 token tiles, last one partial.
    x2 = jax.random.normal(kx2, (1, 3, 24, 20), jnp.float32)
    p2 = init_params(kp2, 16)
    out2 = jax.block_until_ready(pe_fn(x2, *p2, tile_tokens=128))
    ref2 = reference(x2, *p2)
    assert out2.shape == (1, 16, 24, 20)
    assert jnp.allclose(out2, ref2, atol=1e-5, rtol=1e-5)

    # 3) Ragged batch block: B=3 with tile_batch=2 -> masked last batch block.
    x3 = jax.random.normal(kx3, (3, 3, H, W), jnp.float32)
    out3 = jax.block_until_ready(pe_fn(x3, *p, tile_batch=2))
    ref3 = reference(x3, *p)
    assert out3.shape == (3, C, H, W)
    assert jnp.allclose(out3, ref3, atol=1e-5, rtol=1e-5)

    print("KERNEL_OK")
</pallas_src>

<mosaic_0001>
module attributes {stable_mosaic.version = 11 : i64} {
  func.func @_pe_mlp_kernel(%arg0: i32, %arg1: i32, %arg2: memref<2x3x256xf32, #tpu.memory_space<vmem>>, %arg3: memref<32x3xf32, #tpu.memory_space<vmem>>, %arg4: memref<32x1xf32, #tpu.memory_space<vmem>>, %arg5: memref<32x32xf32, #tpu.memory_space<vmem>>, %arg6: memref<32x1xf32, #tpu.memory_space<vmem>>, %arg7: memref<2x32x256xf32, #tpu.memory_space<vmem>>) attributes {dimension_semantics = [#tpu.dimension_semantics<parallel>, #tpu.dimension_semantics<parallel>], iteration_bounds = array<i64: 1, 1>, scalar_prefetch = 0 : i64, scratch_operands = 0 : i64, tpu.core_type = #tpu.core_type<tc>, window_params = [{transform_indices = @transform_0, window_bounds = array<i64: 2, 3, 256>}, {pipeline_mode = #tpu.pipeline_mode<synchronous>, transform_indices = @transform_1, window_bounds = array<i64: 32, 3>}, {pipeline_mode = #tpu.pipeline_mode<synchronous>, transform_indices = @transform_2, window_bounds = array<i64: 32, 1>}, {pipeline_mode = #tpu.pipeline_mode<synchronous>, transform_indices = @transform_3, window_bounds = array<i64: 32, 32>}, {pipeline_mode = #tpu.pipeline_mode<synchronous>, transform_indices = @transform_4, window_bounds = array<i64: 32, 1>}, {transform_indices = @transform_5, window_bounds = array<i64: 2, 32, 256>}]} {
    %c0 = arith.constant 0 : index
    %c0_0 = arith.constant 0 : index
    %0 = vector.load %arg3[%c0, %c0_0] : memref<32x3xf32, #tpu.memory_space<vmem>>, vector<32x3xf32>
    %c0_1 = arith.constant 0 : index
    %c0_2 = arith.constant 0 : index
    %1 = vector.load %arg4[%c0_1, %c0_2] : memref<32x1xf32, #tpu.memory_space<vmem>>, vector<32x1xf32>
    %c0_3 = arith.constant 0 : index
    %c0_4 = arith.constant 0 : index
    %2 = vector.load %arg5[%c0_3, %c0_4] : memref<32x32xf32, #tpu.memory_space<vmem>>, vector<32x32xf32>
    %c0_5 = arith.constant 0 : index
    %c0_6 = arith.constant 0 : index
    %3 = vector.load %arg6[%c0_5, %c0_6] : memref<32x1xf32, #tpu.memory_space<vmem>>, vector<32x1xf32>
    %c0_7 = arith.constant 0 : index
    %c0_8 = arith.constant 0 : index
    %c0_9 = arith.constant 0 : index
    %4 = vector.load %arg2[%c0_7, %c0_8, %c0_9] : memref<2x3x256xf32, #tpu.memory_space<vmem>>, vector<1x3x256xf32>
    %5 = vector.shape_cast %4 : vector<1x3x256xf32> to vector<3x256xf32>
    %6 = vector.extract_strided_slice %0 {offsets = [0, 0], sizes = [32, 1], strides = [1, 1]} : vector<32x3xf32> to vector<32x1xf32>
    %7 = vector.extract_strided_slice %5 {offsets = [0, 0], sizes = [1, 256], strides = [1, 1]} : vector<3x256xf32> to vector<1x256xf32>
    %8 = vector.broadcast %6 : vector<32x1xf32> to vector<32x256xf32>
    %9 = vector.broadcast %7 : vector<1x256xf32> to vector<32x256xf32>
    %10 = arith.mulf %8, %9 : vector<32x256xf32>
    %11 = vector.extract_strided_slice %0 {offsets = [0, 1], sizes = [32, 1], strides = [1, 1]} : vector<32x3xf32> to vector<32x1xf32>
    %12 = vector.extract_strided_slice %5 {offsets = [1, 0], sizes = [1, 256], strides = [1, 1]} : vector<3x256xf32> to vector<1x256xf32>
    %13 = vector.broadcast %11 : vector<32x1xf32> to vector<32x256xf32>
    %14 = vector.broadcast %12 : vector<1x256xf32> to vector<32x256xf32>
    %15 = arith.mulf %13, %14 : vector<32x256xf32>
    %16 = arith.addf %10, %15 : vector<32x256xf32>
    %17 = vector.extract_strided_slice %0 {offsets = [0, 2], sizes = [32, 1], strides = [1, 1]} : vector<32x3xf32> to vector<32x1xf32>
    %18 = vector.extract_strided_slice %5 {offsets = [2, 0], sizes = [1, 256], strides = [1, 1]} : vector<3x256xf32> to vector<1x256xf32>
    %19 = vector.broadcast %17 : vector<32x1xf32> to vector<32x256xf32>
    %20 = vector.broadcast %18 : vector<1x256xf32> to vector<32x256xf32>
    %21 = arith.mulf %19, %20 : vector<32x256xf32>
    %22 = arith.addf %16, %21 : vector<32x256xf32>
    %23 = vector.broadcast %1 : vector<32x1xf32> to vector<32x256xf32>
    %24 = arith.addf %22, %23 : vector<32x256xf32>
    %cst = arith.constant 0.000000e+00 : f32
    %25 = vector.broadcast %cst : f32 to vector<32x256xf32>
    %26 = arith.maximumf %24, %25 : vector<32x256xf32>
    %cst_10 = arith.constant dense<0.000000e+00> : vector<32x256xf32>
    %27 = tpu.matmul %2, %26, %cst_10 {dimension_numbers = #tpu.dot_dimension_numbers<[1], [0], [0], [1], [0, 0, 1, 1], [], []>} : vector<32x32xf32>, vector<32x256xf32>, vector<32x256xf32> -> vector<32x256xf32>
    %28 = vector.broadcast %3 : vector<32x1xf32> to vector<32x256xf32>
    %29 = arith.addf %27, %28 : vector<32x256xf32>
    %c0_11 = arith.constant 0 : index
    %c0_12 = arith.constant 0 : index
    %c0_13 = arith.constant 0 : index
    %30 = vector.load %arg7[%c0_11, %c0_12, %c0_13] : memref<2x32x256xf32, #tpu.memory_space<vmem>>, vector<1x32x256xf32>
    %31 = vector.shape_cast %30 : vector<1x32x256xf32> to vector<32x256xf32>
    %32 = vector.shape_cast %29 : vector<32x256xf32> to vector<1x32x256xf32>
    tpu.vector_store %arg7[%c0_11, %c0_12, %c0_13], %32 {strides = array<i32>} : memref<2x32x256xf32, #tpu.memory_space<vmem>>, vector<1x32x256xf32>,
    %c1 = arith.constant 1 : index
    %c0_14 = arith.constant 0 : index
    %c0_15 = arith.constant 0 : index
    %33 = vector.load %arg2[%c1, %c0_14, %c0_15] : memref<2x3x256xf32, #tpu.memory_space<vmem>>, vector<1x3x256xf32>
    %34 = vector.shape_cast %33 : vector<1x3x256xf32> to vector<3x256xf32>
    %35 = vector.extract_strided_slice %0 {offsets = [0, 0], sizes = [32, 1], strides = [1, 1]} : vector<32x3xf32> to vector<32x1xf32>
    %36 = vector.extract_strided_slice %34 {offsets = [0, 0], sizes = [1, 256], strides = [1, 1]} : vector<3x256xf32> to vector<1x256xf32>
    %37 = vector.broadcast %35 : vector<32x1xf32> to vector<32x256xf32>
    %38 = vector.broadcast %36 : vector<1x256xf32> to vector<32x256xf32>
    %39 = arith.mulf %37, %38 : vector<32x256xf32>
    %40 = vector.extract_strided_slice %0 {offsets = [0, 1], sizes = [32, 1], strides = [1, 1]} : vector<32x3xf32> to vector<32x1xf32>
    %41 = vector.extract_strided_slice %34 {offsets = [1, 0], sizes = [1, 256], strides = [1, 1]} : vector<3x256xf32> to vector<1x256xf32>
    %42 = vector.broadcast %40 : vector<32x1xf32> to vector<32x256xf32>
    %43 = vector.broadcast %41 : vector<1x256xf32> to vector<32x256xf32>
    %44 = arith.mulf %42, %43 : vector<32x256xf32>
    %45 = arith.addf %39, %44 : vector<32x256xf32>
    %46 = vector.extract_strided_slice %0 {offsets = [0, 2], sizes = [32, 1], strides = [1, 1]} : vector<32x3xf32> to vector<32x1xf32>
    %47 = vector.extract_strided_slice %34 {offsets = [2, 0], sizes = [1, 256], strides = [1, 1]} : vector<3x256xf32> to vector<1x256xf32>
    %48 = vector.broadcast %46 : vector<32x1xf32> to vector<32x256xf32>
    %49 = vector.broadcast %47 : vector<1x256xf32> to vector<32x256xf32>
    %50 = arith.mulf %48, %49 : vector<32x256xf32>
    %51 = arith.addf %45, %50 : vector<32x256xf32>
    %52 = vector.broadcast %1 : vector<32x1xf32> to vector<32x256xf32>
    %53 = arith.addf %51, %52 : vector<32x256xf32>
    %cst_16 = arith.constant 0.000000e+00 : f32
    %54 = vector.broadcast %cst_16 : f32 to vector<32x256xf32>
    %55 = arith.maximumf %53, %54 : vector<32x256xf32>
    %cst_17 = arith.constant dense<0.000000e+00> : vector<32x256xf32>
    %56 = tpu.matmul %2, %55, %cst_17 {dimension_numbers = #tpu.dot_dimension_numbers<[1], [0], [0], [1], [0, 0, 1, 1], [], []>} : vector<32x32xf32>, vector<32x256xf32>, vector<32x256xf32> -> vector<32x256xf32>
    %57 = vector.broadcast %3 : vector<32x1xf32> to vector<32x256xf32>
    %58 = arith.addf %56, %57 : vector<32x256xf32>
    %c1_18 = arith.constant 1 : index
    %c0_19 = arith.constant 0 : index
    %c0_20 = arith.constant 0 : index
    %59 = vector.load %arg7[%c1_18, %c0_19, %c0_20] : memref<2x32x256xf32, #tpu.memory_space<vmem>>, vector<1x32x256xf32>
    %60 = vector.shape_cast %59 : vector<1x32x256xf32> to vector<32x256xf32>
    %61 = vector.shape_cast %58 : vector<32x256xf32> to vector<1x32x256xf32>
    tpu.vector_store %arg7[%c1_18, %c0_19, %c0_20], %61 {strides = array<i32>} : memref<2x32x256xf32, #tpu.memory_space<vmem>>, vector<1x32x256xf32>,
    return
  }
  func.func @transform_0(%arg0: i32, %arg1: i32) -> (i32, i32, i32) {
    %c0_i32 = arith.constant 0 : i32
    %c0_i32_0 = arith.constant 0 : i32
    return %arg0, %c0_i32, %arg1 : i32, i32, i32
  }
  func.func @transform_1(%arg0: i32, %arg1: i32) -> (i32, i32) {
    %c0_i32 = arith.constant 0 : i32
    %c0_i32_0 = arith.constant 0 : i32
    %c0_i32_1 = arith.constant 0 : i32
    return %c0_i32, %c0_i32_0 : i32, i32
  }
  func.func @transform_2(%arg0: i32, %arg1: i32) -> (i32, i32) {
    %c0_i32 = arith.constant 0 : i32
    %c0_i32_0 = arith.constant 0 : i32
    %c0_i32_1 = arith.constant 0 : i32
    return %c0_i32, %c0_i32_0 : i32, i32
  }
  func.func @transform_3(%arg0: i32, %arg1: i32) -> (i32, i32) {
    %c0_i32 = arith.constant 0 : i32
    %c0_i32_0 = arith.constant 0 : i32
    %c0_i32_1 = arith.constant 0 : i32
    return %c0_i32, %c0_i32_0 : i32, i32
  }
  func.func @transform_4(%arg0: i32, %arg1: i32) -> (i32, i32) {
    %c0_i32 = arith.constant 0 : i32
    %c0_i32_0 = arith.constant 0 : i32
    %c0_i32_1 = arith.constant 0 : i32
    return %c0_i32, %c0_i32_0 : i32, i32
  }
  func.func @transform_5(%arg0: i32, %arg1: i32) -> (i32, i32, i32) {
    %c0_i32 = arith.constant 0 : i32
    %c0_i32_0 = arith.constant 0 : i32
    return %arg0, %c0_i32, %arg1 : i32, i32, i32
  }
}

</mosaic_0001>

<llo_original>
// kernel: pe_carte_mlp.1
$region0: #{pe_carte_mlp.1}
  #allocation0 [shape = 'u32[]', space=smem, size = 0x4, offset = 0x4, fixed_abs, tag = 'smem constant byte address 0x4 - core index']
  #allocation1 [shape = 'u32[72,128]{1,0:T(1,128)}', space=vmem, size = 0x9000, scoped, tag = 'internal scratch']
  %s0 = inlined_call_operand.vmem [shape: f32[2,3,256], index: 0, kind: input, shape index: {}]
  %s1 = inlined_call_operand.vmem [shape: f32[32,3], index: 1, kind: input, shape index: {}]
  %s2 = inlined_call_operand.vmem [shape: f32[32,1], index: 2, kind: input, shape index: {}]
  %s3 = inlined_call_operand.vmem [shape: f32[32,32], index: 3, kind: input, shape index: {}]
  %s4 = inlined_call_operand.vmem [shape: f32[32,1], index: 4, kind: input, shape index: {}]
  %s5 = inlined_call_operand.vmem [shape: f32[2,32,256], index: 5, kind: output, shape index: {}]
  %s6 = sld [smem:[#allocation0]]
  $region30: #{pe_carte_mlp.1} parent=0
    _
  %s8 = ssub.s32 1, %s6
  %s9 = scalar_select 0, %s8, %s6
  // Predicated region
  $region2: #{pe_carte_mlp.1} parent=0 // pred_check
    _
  $region3: #{pe_carte_mlp.1} parent=0 // pred_check_branch
    %11 = sbr.rel (0) target = $region5
  $region4: #{pe_carte_mlp.1} parent=0 // pred_region
    _
  $region5: #{pe_carte_mlp.1} parent=0 // pred_fallthru
    _
  // Predicated region
  $region6: #{pe_carte_mlp.1} parent=0 // pred_check
    _
  $region7: #{pe_carte_mlp.1} parent=0 // pred_check_branch
    %13 = sbr.rel (0) target = $region9
  $region8: #{pe_carte_mlp.1} parent=0 // pred_region
    _
  $region9: #{pe_carte_mlp.1} parent=0 // pred_fallthru
    _
  // Predicated region
  $region10: #{pe_carte_mlp.1} parent=0 // pred_check
    _
  $region11: #{pe_carte_mlp.1} parent=0 // pred_check_branch
    %15 = sbr.rel (0) target = $region13
  $region12: #{pe_carte_mlp.1} parent=0 // pred_region
    _
  $region13: #{pe_carte_mlp.1} parent=0 // pred_fallthru
    _
  // Predicated region
  $region14: #{pe_carte_mlp.1} parent=0 // pred_check
    _
  $region15: #{pe_carte_mlp.1} parent=0 // pred_check_branch
    %17 = sbr.rel (0) target = $region17
  $region16: #{pe_carte_mlp.1} parent=0 // pred_region
    _
  $region17: #{pe_carte_mlp.1} parent=0 // pred_fallthru
    _
  // Predicated region
  $region18: #{pe_carte_mlp.1} parent=0 // pred_check
    _
  $region19: #{pe_carte_mlp.1} parent=0 // pred_check_branch
    %19 = sbr.rel (0) target = $region21
  $region20: #{pe_carte_mlp.1} parent=0 // pred_region
    _
  $region21: #{pe_carte_mlp.1} parent=0 // pred_fallthru
    _
  %v20 = vld [vmem:[%s1] sm:$0xff]
  %v21 = vld [vmem:[%s1 + $0x8] sm:$0xff]
  %v22 = vld [vmem:[%s1 + $0x10] sm:$0xff]
  %v23 = vld [vmem:[%s1 + $0x18] sm:$0xff]
  %v24 = vld [vmem:[%s2] sm:$0xff]
  %v25 = vld [vmem:[%s2 + $0x8] sm:$0xff]
  %v26 = vld [vmem:[%s2 + $0x10] sm:$0xff]
  %v27 = vld [vmem:[%s2 + $0x18] sm:$0xff]
  %v28 = vld [vmem:[%s3] sm:$0xff]
  %v29 = vld [vmem:[%s3 + $0x8] sm:$0xff]
  %v30 = vld [vmem:[%s3 + $0x10] sm:$0xff]
  %v31 = vld [vmem:[%s3 + $0x18] sm:$0xff]
  %v32 = vld [vmem:[%s4] sm:$0xff]
  %v33 = vld [vmem:[%s4 + $0x8] sm:$0xff]
  %v34 = vld [vmem:[%s4 + $0x10] sm:$0xff]
  %v35 = vld [vmem:[%s4 + $0x18] sm:$0xff]
  %v36 = vld [vmem:[%s0] sm:$0x77]
  %38 = vset.pattern.permute.xlu0 0
  %39 = vperm.xlu0 %38, %v20
  %v40 = vpop.permute.xlu0 %39
  %43 = vset.pattern.permute.xlu0 0
  %44 = vperm.xlu0 %43, %v21
  %v45 = vpop.permute.xlu0 %44
  %48 = vset.pattern.permute.xlu0 0
  %49 = vperm.xlu0 %48, %v22
  %v50 = vpop.permute.xlu0 %49
  %53 = vset.pattern.permute.xlu0 0
  %54 = vperm.xlu0 %53, %v23
  %v55 = vpop.permute.xlu0 %54
  %v58 = vperm.slane %v36, 0
  %v59 = vperm.slane %v36, 4
  %v62 = vperm.slane %v58, 0
  %v63 = vperm.slane %v59, 0
  %v64 = vmul.f32 %v40, %v62
  %v65 = vmul.f32 %v40, %v63
  %v66 = vmul.f32 %v45, %v62
  %v67 = vmul.f32 %v45, %v63
  %v68 = vmul.f32 %v50, %v62
  %v69 = vmul.f32 %v50, %v63
  %v70 = vmul.f32 %v55, %v62
  %v71 = vmul.f32 %v55, %v63
  %72 = vset.pattern.permute.xlu0 1
  %73 = vperm.xlu0 %72, %v20
  %v74 = vpop.permute.xlu0 %73
  %76 = vset.pattern.permute.xlu0 1
  %77 = vperm.xlu0 %76, %v21
  %v78 = vpop.permute.xlu0 %77
  %80 = vset.pattern.permute.xlu0 1
  %81 = vperm.xlu0 %80, %v22
  %v82 = vpop.permute.xlu0 %81
  %84 = vset.pattern.permute.xlu0 1
  %85 = vperm.xlu0 %84, %v23
  %v86 = vpop.permute.xlu0 %85
  %v88 = vperm.slane %v36, 1
  %v89 = vperm.slane %v36, 5
  %v92 = vperm.slane %v88, 1
  %v93 = vperm.slane %v89, 1
  %v94 = vmul.f32 %v74, %v92
  %v95 = vmul.f32 %v74, %v93
  %v96 = vmul.f32 %v78, %v92
  %v97 = vmul.f32 %v78, %v93
  %v98 = vmul.f32 %v82, %v92
  %v99 = vmul.f32 %v82, %v93
  %v100 = vmul.f32 %v86, %v92
  %v101 = vmul.f32 %v86, %v93
  %v102 = vadd.f32 %v64, %v94
  %v103 = vadd.f32 %v65, %v95
  %v104 = vadd.f32 %v66, %v96
  %v105 = vadd.f32 %v67, %v97
  %v106 = vadd.f32 %v68, %v98
  %v107 = vadd.f32 %v69, %v99
  %v108 = vadd.f32 %v70, %v100
  %v109 = vadd.f32 %v71, %v101
  %110 = vset.pattern.permute.xlu0 2
  %111 = vperm.xlu0 %110, %v20
  %v112 = vpop.permute.xlu0 %111
  %114 = vset.pattern.permute.xlu0 2
  %115 = vperm.xlu0 %114, %v21
  %v116 = vpop.permute.xlu0 %115
  %118 = vset.pattern.permute.xlu0 2
  %119 = vperm.xlu0 %118, %v22
  %v120 = vpop.permute.xlu0 %119
  %122 = vset.pattern.permute.xlu0 2
  %123 = vperm.xlu0 %122, %v23
  %v124 = vpop.permute.xlu0 %123
  %v126 = vperm.slane %v36, 2
  %v127 = vperm.slane %v36, 6
  %v130 = vperm.slane %v126, 2
  %v131 = vperm.slane %v127, 2
  %v132 = vmul.f32 %v112, %v130
  %v133 = vmul.f32 %v112, %v131
  %v134 = vmul.f32 %v116, %v130
  %v135 = vmul.f32 %v116, %v131
  %v136 = vmul.f32 %v120, %v130
  %v137 = vmul.f32 %v120, %v131
  %v138 = vmul.f32 %v124, %v130
  %v139 = vmul.f32 %v124, %v131
  %v140 = vadd.f32 %v102, %v132
  %v141 = vadd.f32 %v103, %v133
  %v142 = vadd.f32 %v104, %v134
  %v143 = vadd.f32 %v105, %v135
  %v144 = vadd.f32 %v106, %v136
  %v145 = vadd.f32 %v107, %v137
  %v146 = vadd.f32 %v108, %v138
  %v147 = vadd.f32 %v109, %v139
  %149 = vset.pattern.permute.xlu0 0
  %150 = vperm.xlu0 %149, %v24
  %v151 = vpop.permute.xlu0 %150
  %154 = vset.pattern.permute.xlu0 0
  %155 = vperm.xlu0 %154, %v25
  %v156 = vpop.permute.xlu0 %155
  %159 = vset.pattern.permute.xlu0 0
  %160 = vperm.xlu0 %159, %v26
  %v161 = vpop.permute.xlu0 %160
  %164 = vset.pattern.permute.xlu0 0
  %165 = vperm.xlu0 %164, %v27
  %v166 = vpop.permute.xlu0 %165
  %v168 = vadd.f32 %v140, %v151
  %v169 = vadd.f32 %v141, %v151
  %v170 = vadd.f32 %v142, %v156
  %v171 = vadd.f32 %v143, %v156
  %v172 = vadd.f32 %v144, %v161
  %v173 = vadd.f32 %v145, %v161
  %v174 = vadd.f32 %v146, %v166
  %v175 = vadd.f32 %v147, %v166
  %v176 = vmax.f32 %v168, 0.0
  %v177 = vmax.f32 %v169, 0.0
  %v178 = vmax.f32 %v170, 0.0
  %v179 = vmax.f32 %v171, 0.0
  %v180 = vmax.f32 %v172, 0.0
  %v181 = vmax.f32 %v173, 0.0
  %v182 = vmax.f32 %v174, 0.0
  %v183 = vmax.f32 %v175, 0.0
  %185 = vset.pattern.permute.xlu0 0
  %186 = vperm.xlu0 %185, %v32
  %v187 = vpop.permute.xlu0 %186
  %190 = vset.pattern.permute.xlu0 0
  %191 = vperm.xlu0 %190, %v33
  %v192 = vpop.permute.xlu0 %191
  %195 = vset.pattern.permute.xlu0 0
  %196 = vperm.xlu0 %195, %v34
  %v197 = vpop.permute.xlu0 %196
  %200 = vset.pattern.permute.xlu0 0
  %201 = vperm.xlu0 %200, %v35
  %v202 = vpop.permute.xlu0 %201
  %vm204 = vcmask 261120
  %v206 = vsel %vm204, %v28, 0
  %v209 = vsel %vm204, %v29, 0
  %v212 = vsel %vm204, %v30, 0
  %v215 = vsel %vm204, %v31, 0
  %217 = vmatpush.msra.mxu0 0.0
  %218 = vmatpush.msra.mxu0 0.0
  %219 = vmatpush.msra.mxu0 0.0
  %220 = vmatpush.msra.mxu0 0.0
  %221 = vmatpush.msra.mxu0 0.0
  %222 = vmatpush.msra.mxu0 0.0
  %223 = vmatpush.msra.mxu0 0.0
  %224 = vmatpush.msra.mxu0 0.0
  %225 = vmatpush.msra.mxu0 0.0
  %226 = vmatpush.msra.mxu0 0.0
  %227 = vmatpush.msra.mxu0 0.0
  %228 = vmatpush.msra.mxu0 0.0
  %229 = vmatpush.msra.mxu0 %v182
  %230 = vmatpush.msra.mxu0 %v180
  %231 = vmatpush.msra.mxu0 %v178
  %232 = vmatpush.msra.mxu0 %v176
  %233 = vmatmul.f32.gmra.mxu0 %v206
  %v234 = vpop.f32.mrf.mxu0
  %v235 = vadd.f32 %v187, %v234
  %236 = vmatmul.f32.gmra.mxu0 %v209
  %v237 = vpop.f32.mrf.mxu0
  %v238 = vadd.f32 %v192, %v237
  %239 = vmatmul.f32.gmra.mxu0 %v212
  %v240 = vpop.f32.mrf.mxu0
  %v241 = vadd.f32 %v197, %v240
  %242 = vmatmul.f32.gmra.mxu0 %v215
  %v243 = vpop.f32.mrf.mxu0
  %v244 = vadd.f32 %v202, %v243
  %245 = vdwg.mxu0
  %246 = vmatpush.msra.mxu0 0.0
  %247 = vmatpush.msra.mxu0 0.0
  %248 = vmatpush.msra.mxu0 0.0
  %249 = vmatpush.msra.mxu0 0.0
  %250 = vmatpush.msra.mxu0 0.0
  %251 = vmatpush.msra.mxu0 0.0
  %252 = vmatpush.msra.mxu0 0.0
  %253 = vmatpush.msra.mxu0 0.0
  %254 = vmatpush.msra.mxu0 0.0
  %255 = vmatpush.msra.mxu0 0.0
  %256 = vmatpush.msra.mxu0 0.0
  %257 = vmatpush.msra.mxu0 0.0
  %258 = vmatpush.msra.mxu0 %v183
  %259 = vmatpush.msra.mxu0 %v181
  %260 = vmatpush.msra.mxu0 %v179
  %261 = vmatpush.msra.mxu0 %v177
  %262 = vmatmul.f32.gmra.mxu0 %v206
  %v263 = vpop.f32.mrf.mxu0
  %v264 = vadd.f32 %v187, %v263
  %265 = vmatmul.f32.gmra.mxu0 %v209
  %v266 = vpop.f32.mrf.mxu0
  %v267 = vadd.f32 %v192, %v266
  %268 = vmatmul.f32.gmra.mxu0 %v212
  %v269 = vpop.f32.mrf.mxu0
  %v270 = vadd.f32 %v197, %v269
  %271 = vmatmul.f32.gmra.mxu0 %v215
  %v272 = vpop.f32.mrf.mxu0
  %v273 = vadd.f32 %v202, %v272
  %274 = vdwg.mxu0
  %275 = vst [vmem:[%s5] sm:$0xff] %v235
  %276 = vst [vmem:[%s5 + $0x8] sm:$0xff] %v264
  %277 = vst [vmem:[%s5 + $0x10] sm:$0xff] %v238
  %278 = vst [vmem:[%s5 + $0x18] sm:$0xff] %v267
  %279 = vst [vmem:[%s5 + $0x20] sm:$0xff] %v241
  %280 = vst [vmem:[%s5 + $0x28] sm:$0xff] %v270
  %281 = vst [vmem:[%s5 + $0x30] sm:$0xff] %v244
  %282 = vst [vmem:[%s5 + $0x38] sm:$0xff] %v273
  %s283 = scalar_lea.vmem %s0, 8
  %v284 = vld [vmem:[%s283] sm:$0x77]
  %v286 = vperm.slane %v284, 0
  %v287 = vperm.slane %v284, 4
  %v290 = vperm.slane %v286, 0
  %v291 = vperm.slane %v287, 0
  %v292 = vmul.f32 %v40, %v290
  %v293 = vmul.f32 %v40, %v291
  %v294 = vmul.f32 %v45, %v290
  %v295 = vmul.f32 %v45, %v291
  %v296 = vmul.f32 %v50, %v290
  %v297 = vmul.f32 %v50, %v291
  %v298 = vmul.f32 %v55, %v290
  %v299 = vmul.f32 %v55, %v291
  %v300 = vperm.slane %v284, 1
  %v301 = vperm.slane %v284, 5
  %v304 = vperm.slane %v300, 1
  %v305 = vperm.slane %v301, 1
  %v306 = vmul.f32 %v74, %v304
  %v307 = vmul.f32 %v74, %v305
  %v308 = vmul.f32 %v78, %v304
  %v309 = vmul.f32 %v78, %v305
  %v310 = vmul.f32 %v82, %v304
  %v311 = vmul.f32 %v82, %v305
  %v312 = vmul.f32 %v86, %v304
  %v313 = vmul.f32 %v86, %v305
  %v314 = vadd.f32 %v292, %v306
  %v315 = vadd.f32 %v293, %v307
  %v316 = vadd.f32 %v294, %v308
  %v317 = vadd.f32 %v295, %v309
  %v318 = vadd.f32 %v296, %v310
  %v319 = vadd.f32 %v297, %v311
  %v320 = vadd.f32 %v298, %v312
  %v321 = vadd.f32 %v299, %v313
  %v322 = vperm.slane %v284, 2
  %v323 = vperm.slane %v284, 6
  %v326 = vperm.slane %v322, 2
  %v327 = vperm.slane %v323, 2
  %v328 = vmul.f32 %v112, %v326
  %v329 = vmul.f32 %v112, %v327
  %v330 = vmul.f32 %v116, %v326
  %v331 = vmul.f32 %v116, %v327
  %v332 = vmul.f32 %v120, %v326
  %v333 = vmul.f32 %v120, %v327
  %v334 = vmul.f32 %v124, %v326
  %v335 = vmul.f32 %v124, %v327
  %v336 = vadd.f32 %v314, %v328
  %v337 = vadd.f32 %v315, %v329
  %v338 = vadd.f32 %v316, %v330
  %v339 = vadd.f32 %v317, %v331
  %v340 = vadd.f32 %v318, %v332
  %v341 = vadd.f32 %v319, %v333
  %v342 = vadd.f32 %v320, %v334
  %v343 = vadd.f32 %v321, %v335
  %v344 = vadd.f32 %v336, %v151
  %v345 = vadd.f32 %v337, %v151
  %v346 = vadd.f32 %v338, %v156
  %v347 = vadd.f32 %v339, %v156
  %v348 = vadd.f32 %v340, %v161
  %v349 = vadd.f32 %v341, %v161
  %v350 = vadd.f32 %v342, %v166
  %v351 = vadd.f32 %v343, %v166
  %v352 = vmax.f32 %v344, 0.0
  %v353 = vmax.f32 %v345, 0.0
  %v354 = vmax.f32 %v346, 0.0
  %v355 = vmax.f32 %v347, 0.0
  %v356 = vmax.f32 %v348, 0.0
  %v357 = vmax.f32 %v349, 0.0
  %v358 = vmax.f32 %v350, 0.0
  %v359 = vmax.f32 %v351, 0.0
  %360 = vmatpush.msra.mxu0 0.0
  %361 = vmatpush.msra.mxu0 0.0
  %362 = vmatpush.msra.mxu0 0.0
  %363 = vmatpush.msra.mxu0 0.0
  %364 = vmatpush.msra.mxu0 0.0
  %365 = vmatpush.msra.mxu0 0.0
  %366 = vmatpush.msra.mxu0 0.0
  %367 = vmatpush.msra.mxu0 0.0
  %368 = vmatpush.msra.mxu0 0.0
  %369 = vmatpush.msra.mxu0 0.0
  %370 = vmatpush.msra.mxu0 0.0
  %371 = vmatpush.msra.mxu0 0.0
  %372 = vmatpush.msra.mxu0 %v358
  %373 = vmatpush.msra.mxu0 %v356
  %374 = vmatpush.msra.mxu0 %v354
  %375 = vmatpush.msra.mxu0 %v352
  %376 = vmatmul.f32.gmra.mxu0 %v206
  %v377 = vpop.f32.mrf.mxu0
  %v378 = vadd.f32 %v187, %v377
  %379 = vmatmul.f32.gmra.mxu0 %v209
  %v380 = vpop.f32.mrf.mxu0
  %v381 = vadd.f32 %v192, %v380
  %382 = vmatmul.f32.gmra.mxu0 %v212
  %v383 = vpop.f32.mrf.mxu0
  %v384 = vadd.f32 %v197, %v383
  %385 = vmatmul.f32.gmra.mxu0 %v215
  %v386 = vpop.f32.mrf.mxu0
  %v387 = vadd.f32 %v202, %v386
  %388 = vdwg.mxu0
  %389 = vmatpush.msra.mxu0 0.0
  %390 = vmatpush.msra.mxu0 0.0
  %391 = vmatpush.msra.mxu0 0.0
  %392 = vmatpush.msra.mxu0 0.0
  %393 = vmatpush.msra.mxu0 0.0
  %394 = vmatpush.msra.mxu0 0.0
  %395 = vmatpush.msra.mxu0 0.0
  %396 = vmatpush.msra.mxu0 0.0
  %397 = vmatpush.msra.mxu0 0.0
  %398 = vmatpush.msra.mxu0 0.0
  %399 = vmatpush.msra.mxu0 0.0
  %400 = vmatpush.msra.mxu0 0.0
  %401 = vmatpush.msra.mxu0 %v359
  %402 = vmatpush.msra.mxu0 %v357
  %403 = vmatpush.msra.mxu0 %v355
  %404 = vmatpush.msra.mxu0 %v353
  %405 = vmatmul.f32.gmra.mxu0 %v206
  %v406 = vpop.f32.mrf.mxu0
  %v407 = vadd.f32 %v187, %v406
  %408 = vmatmul.f32.gmra.mxu0 %v209
  %v409 = vpop.f32.mrf.mxu0
  %v410 = vadd.f32 %v192, %v409
  %411 = vmatmul.f32.gmra.mxu0 %v212
  %v412 = vpop.f32.mrf.mxu0
  %v413 = vadd.f32 %v197, %v412
  %414 = vmatmul.f32.gmra.mxu0 %v215
  %v415 = vpop.f32.mrf.mxu0
  %v416 = vadd.f32 %v202, %v415
  %417 = vdwg.mxu0
  %s418 = scalar_lea.vmem %s5, 64
  %419 = vst [vmem:[%s418] sm:$0xff] %v378
  %420 = vst [vmem:[%s418 + $0x8] sm:$0xff] %v407
  %421 = vst [vmem:[%s418 + $0x10] sm:$0xff] %v381
  %422 = vst [vmem:[%s418 + $0x18] sm:$0xff] %v410
  %423 = vst [vmem:[%s418 + $0x20] sm:$0xff] %v384
  %424 = vst [vmem:[%s418 + $0x28] sm:$0xff] %v413
  %425 = vst [vmem:[%s418 + $0x30] sm:$0xff] %v387
  %426 = vst [vmem:[%s418 + $0x38] sm:$0xff] %v416
  // Predicated region
  $region22: #{pe_carte_mlp.1} parent=0 // pred_check
    _
  $region23: #{pe_carte_mlp.1} parent=0 // pred_check_branch
    %428 = sbr.rel (0) target = $region25
  $region24: #{pe_carte_mlp.1} parent=0 // pred_region
    _
  $region25: #{pe_carte_mlp.1} parent=0 // pred_fallthru
    _
  // Predicated region
  $region26: #{pe_carte_mlp.1} parent=0 // pred_check
    _
  $region27: #{pe_carte_mlp.1} parent=0 // pred_check_branch
    %430 = sbr.rel (0) target = $region29
  $region28: #{pe_carte_mlp.1} parent=0 // pred_region
    _
  $region29: #{pe_carte_mlp.1} parent=0 // pred_fallthru
    _

</llo_original>
